<compile_context>
chip_gen: v6e
topology: v6e:2x2x1
jax: 0.10.0
libtpu: 0.0.40
codegen_flags: <defaults>
</compile_context>

<pallas_src>
import functools

import jax
import jax.numpy as jnp
from jax.experimental import pallas as pl
from jax.experimental.pallas import tpu as pltpu

_LANES = 128


def _combined_loss_kernel(logits_ref, targets_ref, out_ref, acc_ref, *,
                          gamma: float, smoothing: float, alpha: tuple,
                          n_total: int, tile_n: int, blocks_per_split: int):
    s = pl.program_id(0)                       # split ("parallel") axis
    i = pl.program_id(1)                       # sweep within the split
    gb = s * blocks_per_split + i              # logical global block index

    logits = logits_ref[...].astype(jnp.float32)     # (C, TILE_N)
    targets = targets_ref[...].astype(jnp.int32)     # (1, TILE_N)
    c, tn = logits.shape

    confidence = 1.0 - smoothing
    inv_c = 1.0 / c
    inv_n = 1.0 / n_total

    # --- log-softmax over the class (sublane) axis ---
    m = jnp.max(logits, axis=0, keepdims=True)                 # (1, T)
    shifted = logits - m                                       # (C, T)
    sumexp = jnp.sum(jnp.exp(shifted), axis=0, keepdims=True)  # (1, T)
    logprobs = shifted - jnp.log(sumexp)                       # (C, T)

    # --- one-hot(targets) via class-id iota on the sublane axis ---
    class_ids = jax.lax.broadcasted_iota(jnp.int32, (c, tn), 0)   # (C, T)
    one_hot = (class_ids == targets).astype(jnp.float32)          # (C, T)

    # log p_t (shared by focal and label smoothing); p_t = exp(log p_t)
    log_pt = jnp.sum(logprobs * one_hot, axis=0, keepdims=True)   # (1, T)
    probs_true = jnp.exp(log_pt)                                  # (1, T)

    # --- focal loss term ---
    w = 1.0 - probs_true
    if gamma == 2.0:
        focal_weight = w * w
    else:
        focal_weight = w ** gamma
    if len(set(alpha)) == 1:
        class_w = alpha[0]                          # uniform alpha -> scalar
    else:
        alpha_col = jnp.asarray(alpha, jnp.float32).reshape(c, 1)
        class_w = jnp.sum(one_hot * alpha_col, axis=0, keepdims=True)
    focal_per = -class_w * focal_weight * log_pt                  # (1, T)

    # --- label smoothing term ---
    nll = -log_pt                                                 # (1, T)
    smooth = -jnp.sum(logprobs, axis=0, keepdims=True) * inv_c    # (1, T)
    ls_per = confidence * nll + smoothing * smooth                # (1, T)

    combined = 2.0 * focal_per + 0.1 * ls_per                     # (1, T)

    @pl.when(i == 0)
    def _():
        acc_ref[...] = jnp.zeros_like(acc_ref)

    # Only the ragged tail (or a fully out-of-range clamped duplicate block)
    # pays for the column mask; interior blocks sum the tile directly.
    ragged = (gb + 1) * tile_n > n_total

    @pl.when(ragged)
    def _():
        col = jax.lax.broadcasted_iota(jnp.int32, (1, tn), 1) + gb * tile_n
        masked = jnp.where(col < n_total, combined, 0.0)
        acc_ref[...] += jnp.sum(masked, axis=-1, keepdims=True)

    @pl.when(jnp.logical_not(ragged))
    def _():
        acc_ref[...] += jnp.sum(combined, axis=-1, keepdims=True)

    @pl.when(i == pl.num_programs(1) - 1)
    def _():
        # Broadcast the (already 1/N-scaled) partial into this split's
        # lane-dense (1, 128) output block.
        out_ref[...] = jnp.broadcast_to(acc_ref[...] * inv_n, out_ref.shape)


def combined_multifocal_loss(logits, targets, *,
                             focal_gamma=2.0, smoothing=0.05,
                             alpha=(2.0, 2.0, 2.0),
                             tile_n=32768, n_splits=2):
    """JAX/Pallas equivalent of CombinedMultifocalLoss.forward."""
    n, c = logits.shape
    assert len(alpha) == c, "alpha must have one entry per class"

    # Lane-dense [C, N] layout: classes on sublanes, batch on the 128-wide
    # lane axis.  Keep native dtype (no HBM upcast); cast to f32 in VMEM.
    # TODO(synk): the transpose is one extra HBM pass over the logits done by
    # XLA outside the kernel; have the producer emit [C, N] (or fuse the
    # transpose upstream) to remove it end-to-end.
    logits_t = logits.T                                   # (C, N)
    targets_row = targets.reshape(1, n).astype(jnp.int8)  # 1 B/sample stream

    # No wrapper-side jnp.pad: Pallas only DMAs the valid window of a ragged
    # last block and the kernel masks the out-of-range lanes.
    padded_n = pl.cdiv(n, _LANES) * _LANES
    tile = max(_LANES, (min(int(tile_n), padded_n) // _LANES) * _LANES)
    n_blocks = pl.cdiv(n, tile)
    splits = max(1, min(int(n_splits), n_blocks))     # 2-way TC split on v7x
    blocks_per_split = pl.cdiv(n_blocks, splits)
    grid = (splits, blocks_per_split)

    def data_map(s, i):
        # Clamp duplicate trailing blocks (when n_blocks % splits != 0) onto
        # the last real block; the kernel masks them to zero.
        return (0, jnp.minimum(s * blocks_per_split + i, n_blocks - 1))

    kernel = functools.partial(
        _combined_loss_kernel,
        gamma=float(focal_gamma),
        smoothing=float(smoothing),
        alpha=tuple(float(a) for a in alpha),
        n_total=n,
        tile_n=tile,
        blocks_per_split=blocks_per_split)

    out = pl.pallas_call(
        kernel,
        out_shape=jax.ShapeDtypeStruct((1, splits * _LANES), jnp.float32),
        grid_spec=pltpu.PrefetchScalarGridSpec(
            num_scalar_prefetch=0,
            grid=grid,
            in_specs=[
                pl.BlockSpec((c, tile), data_map),
                pl.BlockSpec((1, tile), data_map),
            ],
            out_specs=pl.BlockSpec((1, _LANES), lambda s, i: (0, s)),
            scratch_shapes=[pltpu.VMEM((1, 1), jnp.float32)],
        ),
        compiler_params=pltpu.CompilerParams(
            dimension_semantics=("parallel", "arbitrary"),
            vmem_limit_bytes=32 * 1024 * 1024),
    )(logits_t, targets_row)

    # One 1/N-scaled partial per split, replicated across its 128-lane group.
    return jnp.sum(out.reshape(splits, _LANES)[:, 0])


def _reference(logits, targets, *, focal_gamma=2.0, smoothing=0.05,
               alpha=(2.0, 2.0, 2.0)):
    """Pure-JAX reference mirroring the PyTorch module."""
    logits = logits.astype(jnp.float32)
    logprobs = jax.nn.log_softmax(logits, axis=-1)
    probs = jax.nn.softmax(logits, axis=1)
    one_hot = jax.nn.one_hot(targets, logits.shape[1], dtype=jnp.float32)

    probs_true = jnp.sum(probs * one_hot, axis=1)
    focal_w = (1.0 - probs_true) ** focal_gamma
    class_w = jnp.sum(one_hot * jnp.asarray(alpha, jnp.float32), axis=1)
    focal = jnp.mean(-class_w * focal_w * jnp.log(probs_true))

    nll = -jnp.take_along_axis(logprobs, targets[:, None], axis=-1)[:, 0]
    smooth = -jnp.mean(logprobs, axis=-1)
    ls = jnp.mean((1.0 - smoothing) * nll + smoothing * smooth)
    return 2.0 * focal + 0.1 * ls


if __name__ == "__main__":
    key = jax.random.PRNGKey(0)
    ks = jax.random.split(key, 6)

    # Small shape consistent with the module: [N, C] logits over C=3 classes.
    N, C = 8, 3
    logits = jax.random.normal(ks[0], (N, C), dtype=jnp.float32)
    targets = jax.random.randint(ks[1], (N,), 0, C, dtype=jnp.int32)
    loss = jax.block_until_ready(combined_multifocal_loss(logits, targets))
    ref = jax.block_until_ready(_reference(logits, targets))
    assert jnp.allclose(loss, ref, rtol=1e-5, atol=1e-5), (loss, ref)

    # Ragged batch (not a multiple of 128), default tile (single ragged block).
    N2 = 1000
    logits2 = jax.random.normal(ks[2], (N2, C), dtype=jnp.float32)
    targets2 = jax.random.randint(ks[3], (N2,), 0, C, dtype=jnp.int32)
    loss2 = jax.block_until_ready(combined_multifocal_loss(logits2, targets2))
    ref2 = jax.block_until_ready(_reference(logits2, targets2))
    assert jnp.allclose(loss2, ref2, rtol=1e-5, atol=1e-5), (loss2, ref2)

    # Same data with a small tile: exercises the 2-way "parallel" split, the
    # multi-block sweep and the ragged-tail mask.
    loss2b = jax.block_until_ready(
        combined_multifocal_loss(logits2, targets2, tile_n=256))
    assert jnp.allclose(loss2b, ref2, rtol=1e-5, atol=1e-5), (loss2b, ref2)

    # Odd block count: exercises the clamped, fully-masked duplicate block.
    N3 = 300
    logits3 = jax.random.normal(ks[4], (N3, C), dtype=jnp.float32)
    targets3 = jax.random.randint(ks[5], (N3,), 0, C, dtype=jnp.int32)
    loss3 = jax.block_until_ready(
        combined_multifocal_loss(logits3, targets3, tile_n=128))
    ref3 = jax.block_until_ready(_reference(logits3, targets3))
    assert jnp.allclose(loss3, ref3, rtol=1e-5, atol=1e-5), (loss3, ref3)

    print("KERNEL_OK")
</pallas_src>

<mosaic_0001>
module attributes {stable_mosaic.version = 11 : i64} {
  func.func @_combined_loss_kernel(%arg0: i32, %arg1: i32, %arg2: memref<3x128xf32, #tpu.memory_space<vmem>>, %arg3: memref<1x128xi8, #tpu.memory_space<vmem>>, %arg4: memref<1x128xf32, #tpu.memory_space<vmem>>, %arg5: memref<1x1xf32, #tpu.memory_space<vmem>>) attributes {dimension_semantics = [#tpu.dimension_semantics<parallel>, #tpu.dimension_semantics<arbitrary>], iteration_bounds = array<i64: 1, 1>, scalar_prefetch = 0 : i64, scratch_operands = 1 : i64, tpu.core_type = #tpu.core_type<tc>, window_params = [{transform_indices = @transform_0, window_bounds = array<i64: 3, 128>}, {transform_indices = @transform_1, window_bounds = array<i64: 1, 128>}, {transform_indices = @transform_2, window_bounds = array<i64: 1, 128>}]} {
    %c1_i32 = arith.constant 1 : i32
    %0 = arith.muli %arg0, %c1_i32 : i32
    %1 = arith.addi %0, %arg1 : i32
    %c0 = arith.constant 0 : index
    %c0_0 = arith.constant 0 : index
    %2 = vector.load %arg2[%c0, %c0_0] : memref<3x128xf32, #tpu.memory_space<vmem>>, vector<3x128xf32>
    %c0_1 = arith.constant 0 : index
    %c0_2 = arith.constant 0 : index
    %3 = vector.load %arg3[%c0_1, %c0_2] : memref<1x128xi8, #tpu.memory_space<vmem>>, vector<1x128xi8>
    %4 = arith.extsi %3 : vector<1x128xi8> to vector<1x128xi32>
    %cst = arith.constant dense<0xFF800000> : vector<128xf32>
    %5 = vector.multi_reduction <maximumf>, %2, %cst [0] : vector<3x128xf32> to vector<128xf32>
    %6 = vector.shape_cast %5 : vector<128xf32> to vector<1x128xf32>
    %7 = vector.broadcast %6 : vector<1x128xf32> to vector<3x128xf32>
    %8 = arith.subf %2, %7 : vector<3x128xf32>
    %9 = math.exp %8 : vector<3x128xf32>
    %cst_3 = arith.constant dense<0.000000e+00> : vector<128xf32>
    %10 = vector.multi_reduction <add>, %9, %cst_3 [0] : vector<3x128xf32> to vector<128xf32>
    %11 = vector.shape_cast %10 : vector<128xf32> to vector<1x128xf32>
    %12 = math.log %11 : vector<1x128xf32>
    %13 = vector.broadcast %12 : vector<1x128xf32> to vector<3x128xf32>
    %14 = arith.subf %8, %13 : vector<3x128xf32>
    %15 = tpu.iota {dimensions = array<i32: 0>} : vector<3x128xi32>
    %16 = vector.broadcast %4 : vector<1x128xi32> to vector<3x128xi32>
    %17 = arith.cmpi eq, %15, %16 : vector<3x128xi32>
    %18 = arith.extui %17 : vector<3x128xi1> to vector<3x128xi32>
    %19 = arith.sitofp %18 : vector<3x128xi32> to vector<3x128xf32>
    %20 = arith.mulf %14, %19 : vector<3x128xf32>
    %cst_4 = arith.constant dense<0.000000e+00> : vector<128xf32>
    %21 = vector.multi_reduction <add>, %20, %cst_4 [0] : vector<3x128xf32> to vector<128xf32>
    %22 = vector.shape_cast %21 : vector<128xf32> to vector<1x128xf32>
    %23 = math.exp %22 : vector<1x128xf32>
    %cst_5 = arith.constant 1.000000e+00 : f32
    %24 = vector.broadcast %cst_5 : f32 to vector<1x128xf32>
    %25 = arith.subf %24, %23 : vector<1x128xf32>
    %26 = arith.mulf %25, %25 : vector<1x128xf32>
    %cst_6 = arith.constant -2.000000e+00 : f32
    %27 = vector.broadcast %cst_6 : f32 to vector<1x128xf32>
    %28 = arith.mulf %27, %26 : vector<1x128xf32>
    %29 = arith.mulf %28, %22 : vector<1x128xf32>
    %cst_7 = arith.constant 0.000000e+00 : f32
    %30 = vector.broadcast %cst_7 : f32 to vector<1x128xf32>
    %31 = arith.subf %30, %22 : vector<1x128xf32>
    %cst_8 = arith.constant dense<0.000000e+00> : vector<128xf32>
    %32 = vector.multi_reduction <add>, %14, %cst_8 [0] : vector<3x128xf32> to vector<128xf32>
    %33 = vector.shape_cast %32 : vector<128xf32> to vector<1x128xf32>
    %cst_9 = arith.constant 0.000000e+00 : f32
    %34 = vector.broadcast %cst_9 : f32 to vector<1x128xf32>
    %35 = arith.subf %34, %33 : vector<1x128xf32>
    %cst_10 = arith.constant 0.333333343 : f32
    %36 = vector.broadcast %cst_10 : f32 to vector<1x128xf32>
    %37 = arith.mulf %35, %36 : vector<1x128xf32>
    %cst_11 = arith.constant 0.949999988 : f32
    %38 = vector.broadcast %cst_11 : f32 to vector<1x128xf32>
    %39 = arith.mulf %38, %31 : vector<1x128xf32>
    %cst_12 = arith.constant 5.000000e-02 : f32
    %40 = vector.broadcast %cst_12 : f32 to vector<1x128xf32>
    %41 = arith.mulf %40, %37 : vector<1x128xf32>
    %42 = arith.addf %39, %41 : vector<1x128xf32>
    %cst_13 = arith.constant 2.000000e+00 : f32
    %43 = vector.broadcast %cst_13 : f32 to vector<1x128xf32>
    %44 = arith.mulf %43, %29 : vector<1x128xf32>
    %cst_14 = arith.constant 1.000000e-01 : f32
    %45 = vector.broadcast %cst_14 : f32 to vector<1x128xf32>
    %46 = arith.mulf %45, %42 : vector<1x128xf32>
    %47 = arith.addf %44, %46 : vector<1x128xf32>
    %c0_i32 = arith.constant 0 : i32
    %48 = arith.cmpi eq, %arg1, %c0_i32 : i32
    %49 = arith.extui %48 : i1 to i32
    %c0_i32_15 = arith.constant 0 : i32
    %50 = arith.cmpi ne, %49, %c0_i32_15 : i32
    scf.if %50 {
      %cst_21 = arith.constant 0.000000e+00 : f32
      %62 = vector.broadcast %cst_21 : f32 to vector<1x1xf32>
      %c0_22 = arith.constant 0 : index
      %c0_23 = arith.constant 0 : index
      %63 = vector.load %arg5[%c0_22, %c0_23] : memref<1x1xf32, #tpu.memory_space<vmem>>, vector<1x1xf32>
      tpu.vector_store %arg5[%c0_22, %c0_23], %62 {strides = array<i32>} : memref<1x1xf32, #tpu.memory_space<vmem>>, vector<1x1xf32>,
    } else {
    }
    %c1_i32_16 = arith.constant 1 : i32
    %51 = arith.addi %1, %c1_i32_16 : i32
    %c128_i32 = arith.constant 128 : i32
    %52 = arith.muli %51, %c128_i32 : i32
    %c8_i32 = arith.constant 8 : i32
    %53 = arith.cmpi sgt, %52, %c8_i32 : i32
    %54 = arith.extui %53 : i1 to i32
    %c0_i32_17 = arith.constant 0 : i32
    %55 = arith.cmpi ne, %54, %c0_i32_17 : i32
    scf.if %55 {
      %62 = tpu.iota {dimensions = array<i32: 1>} : vector<1x128xi32>
      %c128_i32_21 = arith.constant 128 : i32
      %63 = arith.muli %1, %c128_i32_21 : i32
      %64 = vector.broadcast %63 : i32 to vector<1x128xi32>
      %65 = arith.addi %62, %64 : vector<1x128xi32>
      %c8_i32_22 = arith.constant 8 : i32
      %66 = vector.broadcast %c8_i32_22 : i32 to vector<1x128xi32>
      %67 = arith.cmpi slt, %65, %66 : vector<1x128xi32>
      %cst_23 = arith.constant 0.000000e+00 : f32
      %68 = vector.broadcast %cst_23 : f32 to vector<1x128xf32>
      %69 = arith.select %67, %47, %68 : vector<1x128xi1>, vector<1x128xf32>
      %c0_24 = arith.constant 0 : index
      %c0_25 = arith.constant 0 : index
      %70 = vector.load %arg5[%c0_24, %c0_25] : memref<1x1xf32, #tpu.memory_space<vmem>>, vector<1x1xf32>
      %cst_26 = arith.constant dense<0.000000e+00> : vector<1xf32>
      %71 = vector.multi_reduction <add>, %69, %cst_26 [1] : vector<1x128xf32> to vector<1xf32>
      %72 = vector.shape_cast %71 : vector<1xf32> to vector<1x1xf32>
      %73 = arith.addf %70, %72 : vector<1x1xf32>
      %c0_27 = arith.constant 0 : index
      %c0_28 = arith.constant 0 : index
      %74 = vector.load %arg5[%c0_27, %c0_28] : memref<1x1xf32, #tpu.memory_space<vmem>>, vector<1x1xf32>
      tpu.vector_store %arg5[%c0_27, %c0_28], %73 {strides = array<i32>} : memref<1x1xf32, #tpu.memory_space<vmem>>, vector<1x1xf32>,
    } else {
    }
    %true = arith.constant true
    %56 = arith.xori %53, %true : i1
    %57 = arith.extui %56 : i1 to i32
    %c0_i32_18 = arith.constant 0 : i32
    %58 = arith.cmpi ne, %57, %c0_i32_18 : i32
    scf.if %58 {
      %c0_21 = arith.constant 0 : index
      %c0_22 = arith.constant 0 : index
      %62 = vector.load %arg5[%c0_21, %c0_22] : memref<1x1xf32, #tpu.memory_space<vmem>>, vector<1x1xf32>
      %cst_23 = arith.constant dense<0.000000e+00> : vector<1xf32>
      %63 = vector.multi_reduction <add>, %47, %cst_23 [1] : vector<1x128xf32> to vector<1xf32>
      %64 = vector.shape_cast %63 : vector<1xf32> to vector<1x1xf32>
      %65 = arith.addf %62, %64 : vector<1x1xf32>
      %c0_24 = arith.constant 0 : index
      %c0_25 = arith.constant 0 : index
      %66 = vector.load %arg5[%c0_24, %c0_25] : memref<1x1xf32, #tpu.memory_space<vmem>>, vector<1x1xf32>
      tpu.vector_store %arg5[%c0_24, %c0_25], %65 {strides = array<i32>} : memref<1x1xf32, #tpu.memory_space<vmem>>, vector<1x1xf32>,
    } else {
    }
    %c0_i32_19 = arith.constant 0 : i32
    %59 = arith.cmpi eq, %arg1, %c0_i32_19 : i32
    %60 = arith.extui %59 : i1 to i32
    %c0_i32_20 = arith.constant 0 : i32
    %61 = arith.cmpi ne, %60, %c0_i32_20 : i32
    scf.if %61 {
      %c0_21 = arith.constant 0 : index
      %c0_22 = arith.constant 0 : index
      %62 = vector.load %arg5[%c0_21, %c0_22] : memref<1x1xf32, #tpu.memory_space<vmem>>, vector<1x1xf32>
      %cst_23 = arith.constant 1.250000e-01 : f32
      %63 = vector.broadcast %cst_23 : f32 to vector<1x1xf32>
      %64 = arith.mulf %62, %63 : vector<1x1xf32>
      %65 = vector.shape_cast %64 : vector<1x1xf32> to vector<1x1xf32>
      %66 = vector.broadcast %65 : vector<1x1xf32> to vector<1x128xf32>
      %c0_24 = arith.constant 0 : index
      %c0_25 = arith.constant 0 : index
      %67 = vector.load %arg4[%c0_24, %c0_25] : memref<1x128xf32, #tpu.memory_space<vmem>>, vector<1x128xf32>
      tpu.vector_store %arg4[%c0_24, %c0_25], %66 {strides = array<i32>} : memref<1x128xf32, #tpu.memory_space<vmem>>, vector<1x128xf32>,
    } else {
    }
    return
  }
  func.func @transform_0(%arg0: i32, %arg1: i32) -> (i32, i32) {
    %c1_i32 = arith.constant 1 : i32
    %0 = arith.muli %arg0, %c1_i32 : i32
    %1 = arith.addi %0, %arg1 : i32
    %c0_i32 = arith.constant 0 : i32
    %2 = arith.minsi %1, %c0_i32 : i32
    %c0_i32_0 = arith.constant 0 : i32
    %c0_i32_1 = arith.constant 0 : i32
    return %c0_i32_0, %2 : i32, i32
  }
  func.func @transform_1(%arg0: i32, %arg1: i32) -> (i32, i32) {
    %c1_i32 = arith.constant 1 : i32
    %0 = arith.muli %arg0, %c1_i32 : i32
    %1 = arith.addi %0, %arg1 : i32
    %c0_i32 = arith.constant 0 : i32
    %2 = arith.minsi %1, %c0_i32 : i32
    %c0_i32_0 = arith.constant 0 : i32
    %c0_i32_1 = arith.constant 0 : i32
    return %c0_i32_0, %2 : i32, i32
  }
  func.func @transform_2(%arg0: i32, %arg1: i32) -> (i32, i32) {
    %c0_i32 = arith.constant 0 : i32
    %c0_i32_0 = arith.constant 0 : i32
    return %c0_i32, %arg0 : i32, i32
  }
}

</mosaic_0001>

<llo_original>
// kernel: tpu_custom_call.1
$region0: #{tpu_custom_call.1}
  #allocation0 [shape = 'u32[]', space=smem, size = 0x4, offset = 0x4, fixed_abs, tag = 'smem constant byte address 0x4 - core index']
  #allocation1 [shape = 'u32[144,128]{1,0:T(1,128)}', space=vmem, size = 0x12000, scoped, tag = 'internal scratch']
  #allocation2 [shape = 'f32[1,1]{1,0:T(1,128)}', space=vmem, size = 0x200, scoped, tag = 'scratch operand']
  %s0 = inlined_call_operand.hbm [shape: f32[3,8], index: 0, kind: input, shape index: {}]
  %s1 = inlined_call_operand.vmem [shape: s8[1,8], index: 1, kind: input, shape index: {}]
  %s2 = inlined_call_operand.hbm [shape: f32[1,128], index: 2, kind: output, shape index: {}]
  %s3 = sld [smem:[#allocation0]]
  $region38: #{tpu_custom_call.1} parent=0
    _
  %s5 = ssub.s32 1, %s3
  %s6 = scalar_select 0, %s5, %s3
  $region1: #{tpu_custom_call.1} parent=0
    #allocation3 [shape = 'u8[2048]{0}', space=vmem, size = 0x800, scoped, tag = 'input window, operand 0, single buffered']
    #allocation4 [shape = 's32[1]{0}', space=sflag, size = 0x4, scoped, tag = 'scoped memory for tpu_custom_call.1']
    #allocation5 [shape = 's32[1]{0}', space=sflag, size = 0x4, scoped, tag = 'scoped memory for tpu_custom_call.1']
    #allocation6 [shape = 'u8[512]{0}', space=vmem, size = 0x400, scoped, tag = 'output window, operand 0, single buffered']
    %7 = vsyncpa [#allocation4], 0
    %8 = vsyncpa [#allocation5], 0
    // Predicated region
    $region2: #{tpu_custom_call.1} parent=1 // pred_check
      _
    $region3: #{tpu_custom_call.1} parent=1 // pred_check_branch
      %10 = sbr.rel (0) target = $region5
    $region4: #{tpu_custom_call.1} parent=1 // pred_region
      %s11 = sadd.s32 0, 0
      %p12 = scmp.lt.s32.totalorder %s11, 0
      %s13 = scalar_select %p12, %s11, 0
      %s15 = ssub.s32 64, 64
      %16 = vsyncadd [#allocation4], %s15
      %s17 = smul.addr %s13, 64
      %s18 = scalar_lea.hbm %s0, %s17
      %s20 = sshll.u32 [#allocation3], 4
      %s21 = int_to_ptr.vmem [resolvable:$true] %s20
      %23 = dma.hbm_to_vmem [thread:$0]  %s18, 64, %s21, [#allocation4]
    $region5: #{tpu_custom_call.1} parent=1 // pred_fallthru
      _
    // Predicated region
    $region6: #{tpu_custom_call.1} parent=1 // pred_check
      _
    $region7: #{tpu_custom_call.1} parent=1 // pred_check_branch
      %25 = sbr.rel (0) target = $region9
    $region8: #{tpu_custom_call.1} parent=1 // pred_region
      %s26 = sadd.s32 0, 0
      %p27 = scmp.lt.s32.totalorder %s26, 0
      %s28 = scalar_select %p27, %s26, 0
      %p29 = scmp.lt.s32.totalorder %s28, 0
      %s30 = scalar_select %p29, %s28, 0
      %s31 = scalar_lea.vmem %s1, %s30
      %s32 = sadd.s32 0, 0
      %p33 = scmp.lt.s32.totalorder %s32, 0
      %s34 = scalar_select %p33, %s32, 0
    $region9: #{tpu_custom_call.1} parent=1 // pred_fallthru
      _
    // Predicated region
    $region10: #{tpu_custom_call.1} parent=1 // pred_check
      _
    $region11: #{tpu_custom_call.1} parent=1 // pred_check_branch
      %36 = sbr.rel (0) target = $region13
    $region12: #{tpu_custom_call.1} parent=1 // pred_region
      %37 = dma.done [#allocation4], 64
    $region13: #{tpu_custom_call.1} parent=1 // pred_fallthru
      _
    %s38 = sadd.s32 0, 0
    %p39 = scmp.lt.s32.totalorder %s38, 0
    %s40 = scalar_select %p39, %s38, 0
    %p41 = scmp.lt.s32.totalorder %s40, 0
    %s42 = scalar_select %p41, %s40, 0
    %s43 = scalar_lea.vmem %s1, %s42
    %s44 = sadd.s32 0, 0
    %p45 = scmp.lt.s32.totalorder %s44, 0
    %s46 = scalar_select %p45, %s44, 0
    %s47 = sadd.s32 0, 0
    %p48 = scmp.lt.s32.totalorder %s47, 0
    %s49 = scalar_select %p48, %s47, 0
    %p50 = scmp.lt.s32.totalorder %s49, 0
    %s51 = scalar_select %p50, %s49, 0
    %s52 = scalar_lea.vmem %s1, %s51
    %s53 = sadd.s32 0, 0
    %p54 = scmp.lt.s32.totalorder %s53, 0
    %s55 = scalar_select %p54, %s53, 0
    %s56 = sadd.s32 0, 0
    %v57 = vld [vmem:[#allocation3] sm:$0x7]
    %v58 = vld [vmem:[%s52] sm:$0x1]
    %v59 = vunpack.c.0.s8 %v58
    %vm60 = vcmask 1042432
    %v61 = vsel %vm60, %v57, -inf
    %v62 = vrot.slane %v61, 4
    %v63 = vmax.f32 %v61, %v62
    %v64 = vrot.slane %v63, 2
    %v65 = vmax.f32 %v63, %v64
    %v66 = vrot.slane %v65, 1
    %v67 = vmax.f32 %v65, %v66
    %v68 = vsub.f32 %v57, %v67
    %v69 = vmul.f32 %v68, 1.442695
    %v70 = vpow.pop %v69
    %v71 = vsel %vm60, %v70, 0.0
    %v72 = vrot.slane %v71, 4
    %v73 = vadd.f32 %v71, %v72
    %v74 = vrot.slane %v73, 2
    %v75 = vadd.f32 %v73, %v74
    %v76 = vrot.slane %v75, 1
    %v77 = vadd.f32 %v75, %v76
    %v78 = vlog2.pop %v77
    %v79 = vmul.f32 %v78, 0.6931472
    %v80 = vsub.f32 %v68, %v79
    %v81 = vlaneseq
    %v82 = vshrl.u32 %v81, 7
    %v83 = vlaneseq
    %v84 = vshrl.u32 %v83, 7
    %v85 = vsub.s32 0, %v84
    %v86 = vrot.slane %v59, %v85
    %vm87 = vcmp.eq.s32.totalorder %v82, %v86
    %v88 = vsel %vm87, 1, 0
    %v89 = vcvt.s32.f32 %v88
    %v90 = vmul.f32 %v80, %v89
    %v91 = vsel %vm60, %v90, 0.0
    %v92 = vrot.slane %v91, 4
    %v93 = vadd.f32 %v91, %v92
    %v94 = vrot.slane %v93, 2
    %v95 = vadd.f32 %v93, %v94
    %v96 = vrot.slane %v95, 1
    %v97 = vadd.f32 %v95, %v96
    %v98 = vmul.f32 %v97, 1.442695
    %v99 = vpow.pop %v98
    %v100 = vsub.f32 1.0, %v99
    %v101 = vmul.f32 %v100, %v100
    %v102 = vmul.f32 %v101, -2.0
    %v103 = vmul.f32 %v102, %v97
    %v104 = vsub.f32 0.0, %v97
    %v105 = vsel %vm60, %v80, 0.0
    %v106 = vrot.slane %v105, 4
    %v107 = vadd.f32 %v105, %v106
    %v108 = vrot.slane %v107, 2
    %v109 = vadd.f32 %v107, %v108
    %v110 = vrot.slane %v109, 1
    %v111 = vadd.f32 %v109, %v110
    %v112 = vsub.f32 0.0, %v111
    %v113 = vmul.f32 %v112, 0.33333334
    %v114 = vmul.f32 %v104, 0.95
    %v115 = vmul.f32 %v113, 0.05
    %v116 = vadd.f32 %v114, %v115
    %v117 = vmul.f32 %v103, 2.0
    %v118 = vmul.f32 %v116, 0.1
    %v119 = vadd.f32 %v117, %v118
    %p120 = scmp.eq.s32.totalorder 0, 0
    // Predicated region
    $region14: #{tpu_custom_call.1} parent=1 // pred_check
      %p121 = pneg %p120
    $region15: #{tpu_custom_call.1} parent=1 // pred_check_branch
      %123 = sbr.rel (%p121) target = $region17
    $region16: #{tpu_custom_call.1} parent=1 // pred_region
      %vm124 = vcmask 0
      %125 = vst.msk [vmem:[#allocation2] sm:$0x1] %vm124, 0.0
    $region17: #{tpu_custom_call.1} parent=1 // pred_fallthru
      _
    %s126 = sadd.s32 %s56, 1
    %s127 = smul.u32 %s126, 128
    %p128 = scmp.gt.s32.totalorder %s127, 8
    // Predicated region
    $region18: #{tpu_custom_call.1} parent=1 // pred_check
      %p129 = pneg %p128
    $region19: #{tpu_custom_call.1} parent=1 // pred_check_branch
      %131 = sbr.rel (%p129) target = $region21
    $region20: #{tpu_custom_call.1} parent=1 // pred_region
      %v132 = vlaneseq
      %v133 = vand.u32 %v132, 127
      %s134 = smul.u32 %s56, 128
      %v135 = vstv %s134
      %v136 = vadd.s32 %v133, %v135
      %vm137 = vcmp.lt.s32.totalorder %v136, 8
      %v138 = vsel %vm137, %v119, 0.0
      %v139 = vld [vmem:[#allocation2] sm:$0x1]
      %140 = vadd.xlane.f32.xlu0 %v138
      %v141 = vpop.xlane.xlu0 %140
      %v142 = vadd.f32 %v139, %v141
      %vm143 = vcmask 0
      %144 = vst.msk [vmem:[#allocation2] sm:$0x1] %vm143, %v142
    $region21: #{tpu_custom_call.1} parent=1 // pred_fallthru
      _
    %p145 = scmp.le.s32.totalorder %s127, 8
    // Predicated region
    $region22: #{tpu_custom_call.1} parent=1 // pred_check
      %p146 = pneg %p145
    $region23: #{tpu_custom_call.1} parent=1 // pred_check_branch
      %148 = sbr.rel (%p146) target = $region25
    $region24: #{tpu_custom_call.1} parent=1 // pred_region
      %v149 = vld [vmem:[#allocation2] sm:$0x1]
      %150 = vadd.xlane.f32.xlu0 %v119
      %v151 = vpop.xlane.xlu0 %150
      %v152 = vadd.f32 %v149, %v151
      %vm153 = vcmask 0
      %154 = vst.msk [vmem:[#allocation2] sm:$0x1] %vm153, %v152
    $region25: #{tpu_custom_call.1} parent=1 // pred_fallthru
      _
    // Predicated region
    $region26: #{tpu_custom_call.1} parent=1 // pred_check
      %p155 = pneg %p120
    $region27: #{tpu_custom_call.1} parent=1 // pred_check_branch
      %157 = sbr.rel (%p155) target = $region29
    $region28: #{tpu_custom_call.1} parent=1 // pred_region
      %v158 = vld [vmem:[#allocation2] sm:$0x1]
      %v159 = vmul.f32 %v158, 0.125
      %161 = vset.pattern.permute.xlu0 0
      %162 = vperm.xlu0 %161, %v159
      %v163 = vpop.permute.xlu0 %162
      %v165 = vlaneseq
      %v166 = vshrl.u32 %v165, 7
      %v167 = vsub.s32 0, %v166
      %v168 = vrot.slane %v163, %v167
      %169 = vst [vmem:[#allocation6] sm:$0x1] %v168
    $region29: #{tpu_custom_call.1} parent=1 // pred_fallthru
      _
    // Predicated region
    $region30: #{tpu_custom_call.1} parent=1 // pred_check
      _
    $region31: #{tpu_custom_call.1} parent=1 // pred_check_branch
      %171 = sbr.rel (0) target = $region33
    $region32: #{tpu_custom_call.1} parent=1 // pred_region
      %s173 = ssub.s32 16, 16
      %174 = vsyncadd [#allocation5], %s173
      %s176 = sshll.u32 [#allocation6], 4
      %s177 = int_to_ptr.vmem [resolvable:$true] %s176
      %179 = dma.vmem_to_hbm [thread:$0]  %s177, 16, %s2, [#allocation5]
    $region33: #{tpu_custom_call.1} parent=1 // pred_fallthru
      _
    // Predicated region
    $region34: #{tpu_custom_call.1} parent=1 // pred_check
      _
    $region35: #{tpu_custom_call.1} parent=1 // pred_check_branch
      %181 = sbr.rel (0) target = $region37
    $region36: #{tpu_custom_call.1} parent=1 // pred_region
      %182 = dma.done [#allocation5], 16
    $region37: #{tpu_custom_call.1} parent=1 // pred_fallthru
      _
    %183 = vsyncpa [#allocation4], 1
    %184 = vsyncpa [#allocation5], 1

</llo_original>
